<compile_context>
chip_gen: v7x
topology: tpu7x:2x2x1
jax: 0.10.0
libtpu: 0.0.40
codegen_flags: <defaults>
</compile_context>

<pallas_src>
import functools
import math

import jax
import jax.numpy as jnp
import numpy as np
from jax import lax
from jax.experimental import pallas as pl
from jax.experimental.pallas import tpu as pltpu

HIDDEN_DIM = 128                 # embed_dim (lane friendly)
NUM_HEADS = 8
HEAD_DIM = HIDDEN_DIM // NUM_HEADS
NUM_CLASSES = 10
CPAD = 128                       # classifier logits padded to a full lane register


def _mha_classifier_kernel(x_ref,       # (bb, E, S)  NCHW-flattened spatial tokens (feature-major)
                           wv_ref,      # (E, E)      value projection, row-major        bf16
                           bv_ref,      # (E, 1)      value bias                          f32
                           ws_ref,      # (H, E)      folded cls-query score weight       bf16
                           bs_ref,      # (H, 1)      folded score bias                   f32
                           sc_ref,      # (H, 1)      cls-key per-head score              f32
                           vc_ref,      # (1, E)      cls value                           f32
                           mt_ref,      # (H, E)      head-selection mask                 f32
                           woc_ref,     # (E, CPAD)   fused out-proj @ classifier weight  bf16
                           boc_ref,     # (1, CPAD)   fused bias                          f32
                           out_ref,     # (1, bb, CPAD)
                           *, bb):
    wv = wv_ref[...]
    bv = bv_ref[...]
    ws = ws_ref[...]
    bs = bs_ref[...]
    score_c = sc_ref[...]
    v_c = vc_ref[...]
    mt = mt_ref[...]

    rows = []
    for bi in range(bb):
        x_b = x_ref[bi].astype(jnp.bfloat16)                                  # (E, S)

        # Value projection and cls-query scores, feature-major (no transpose, no K/Q).
        v_t = jnp.dot(wv, x_b, preferred_element_type=jnp.float32) + bv       # (E, S) f32
        scores = jnp.dot(ws, x_b, preferred_element_type=jnp.float32) + bs    # (H, S) f32

        # Per-head softmax over (S spatial + 1 cls) keys; all softmax math in f32 (v5e).
        mx = jnp.maximum(jnp.max(scores, axis=1, keepdims=True), score_c)     # (H, 1)
        p = jnp.exp(scores - mx)                                              # (H, S)
        p_c = jnp.exp(score_c - mx)                                           # (H, 1)
        denom = jnp.sum(p, axis=1, keepdims=True) + p_c                       # (H, 1)

        # ctx_h[h, e] = sum_s p[h, s] * v_t[e, s]   (key-length reduction on the MXU).
        ctx_h = lax.dot_general(p.astype(jnp.bfloat16), v_t.astype(jnp.bfloat16),
                                (((1,), (1,)), ((), ())),
                                preferred_element_type=jnp.float32)           # (H, E)
        ctx_h = ctx_h + p_c * v_c                                             # cls-key contribution
        inv = pl.reciprocal(denom, approx=True)                               # (H, 1) EUP slot
        rows.append(jnp.sum(ctx_h * (inv * mt), axis=0, keepdims=True))       # (1, E) normalized

    ctx_all = rows[0] if bb == 1 else jnp.concatenate(rows, axis=0)           # (bb, E)
    logits = jnp.dot(ctx_all.astype(jnp.bfloat16), woc_ref[...],
                     preferred_element_type=jnp.float32) + boc_ref[...]       # (bb, CPAD)
    out_ref[0] = logits


def prepare_params(params):
    """One-time weight preprocessing: fold K-proj + cls constants, fuse out-proj/classifier."""
    E, H, C = HIDDEN_DIM, NUM_HEADS, NUM_CLASSES
    scale = 1.0 / math.sqrt(HEAD_DIM)
    f32 = jnp.float32

    cls = params["cls_token"].astype(f32)                                    # (1, E)
    # cls-token projections are constants of the forward pass.
    q0 = cls @ params["wq"].T + params["bq"]                                 # (1, E) cls query
    k_c = cls @ params["wk"].T + params["bk"]                                # (1, E) cls key
    v_c = cls @ params["wv"].T + params["bv"]                                # (1, E) cls value

    head_ids = jnp.arange(E) // HEAD_DIM
    mask = (head_ids[:, None] == jnp.arange(H)[None, :]).astype(f32)         # (E, H)

    # scores[l, h] = x_l @ W_score[:, h] + b_score[h]   (exact algebra: K-proj folded)
    qm = mask * (q0[0][:, None] * scale)                                     # (E, H)
    w_score = params["wk"].T @ qm                                            # (E, H)
    b_score = params["bk"][None, :] @ qm                                     # (1, H)
    score_c = k_c @ qm                                                       # (1, H) cls-key score

    # Fused out-projection + classifier (padded to 128 lanes).
    wc_pad = jnp.zeros((E, CPAD), f32).at[:, :C].set(params["wc"].T)
    bc_pad = jnp.zeros((1, CPAD), f32).at[0, :C].set(params["bc"])
    w_oc = params["wo"].T @ wc_pad                                           # (E, CPAD)
    b_oc = params["bo"][None, :] @ wc_pad + bc_pad                           # (1, CPAD)

    return dict(
        wv=params["wv"].astype(jnp.bfloat16),                                # (E, E) row-major
        bv=params["bv"][:, None].astype(f32),                                # (E, 1)
        ws_t=w_score.T.astype(jnp.bfloat16),                                 # (H, E)
        bs_t=b_score.T.astype(f32),                                          # (H, 1)
        score_c_t=score_c.T.astype(f32),                                     # (H, 1)
        v_c=v_c.astype(f32),                                                 # (1, E)
        mt=mask.T.astype(f32),                                               # (H, E)
        w_oc=w_oc.astype(jnp.bfloat16),                                      # (E, CPAD)
        b_oc=b_oc.astype(f32),                                               # (1, CPAD)
    )


def _pick_batch_block(b, e, s, itemsize):
    # Prefer >= 2 grid steps (x-DMA double buffering; v7x 2-TC sharding of the parallel
    # batch axis) and cap the per-step x tile at ~4 MiB so it also fits v7x's smaller
    # (64 MiB physical / ~32 MiB scoped) VMEM with double-buffer headroom.
    cap = max(1, (4 << 20) // (e * s * itemsize))
    bb = min(max(1, b // 2), cap) if b > 1 else 1
    while b % bb:
        bb -= 1
    return bb


def mha_classifier_forward(x_nchw, prep, *, batch_block=None):
    b, e, hh, ww = x_nchw.shape
    assert e == HIDDEN_DIM
    s = hh * ww
    assert s % 8 == 0, "spatial token count must be sublane aligned"
    x3 = x_nchw.reshape(b, e, s)          # metadata-only reshape; no HBM transpose/concat

    bb = _pick_batch_block(b, e, s, x3.dtype.itemsize) if batch_block is None else batch_block
    assert b % bb == 0
    nblk = b // bb

    kernel = functools.partial(_mha_classifier_kernel, bb=bb)
    full = lambda a: pl.BlockSpec(a.shape, lambda i: (0,) * a.ndim)

    out3 = pl.pallas_call(
        kernel,
        out_shape=jax.ShapeDtypeStruct((nblk, bb, CPAD), jnp.float32),
        grid=(nblk,),
        in_specs=[
            pl.BlockSpec((bb, e, s), lambda i: (i, 0, 0)),
            full(prep["wv"]), full(prep["bv"]),
            full(prep["ws_t"]), full(prep["bs_t"]),
            full(prep["score_c_t"]), full(prep["v_c"]), full(prep["mt"]),
            full(prep["w_oc"]), full(prep["b_oc"]),
        ],
        out_specs=pl.BlockSpec((1, bb, CPAD), lambda i: (i, 0, 0)),
        compiler_params=pltpu.CompilerParams(dimension_semantics=("parallel",)),
    )(x3, prep["wv"], prep["bv"], prep["ws_t"], prep["bs_t"],
      prep["score_c_t"], prep["v_c"], prep["mt"], prep["w_oc"], prep["b_oc"])
    return out3.reshape(b, CPAD)[:, :NUM_CLASSES]


def reference_forward(x_nchw, params):
    """Pure-JAX f32 reference matching torch.nn.MultiheadAttention semantics."""
    b, e, _, _ = x_nchw.shape
    x = x_nchw.reshape(b, e, -1).transpose(0, 2, 1)
    cls = jnp.broadcast_to(params["cls_token"][None, :, :], (b, 1, e))
    x = jnp.concatenate([cls, x], axis=1)                                    # (B, L, E)
    L = x.shape[1]

    q = x @ params["wq"].T + params["bq"]
    k = x @ params["wk"].T + params["bk"]
    v = x @ params["wv"].T + params["bv"]

    def split(t):
        return t.reshape(b, L, NUM_HEADS, HEAD_DIM).transpose(0, 2, 1, 3)

    qh, kh, vh = split(q), split(k), split(v)
    scores = jnp.einsum("bhqd,bhkd->bhqk", qh, kh) / math.sqrt(HEAD_DIM)
    attn = jax.nn.softmax(scores, axis=-1)
    ctx = jnp.einsum("bhqk,bhkd->bhqd", attn, vh)
    ctx = ctx.transpose(0, 2, 1, 3).reshape(b, L, e)
    attn_out = ctx @ params["wo"].T + params["bo"]
    iou_token_out = attn_out[:, 0, :]
    return iou_token_out @ params["wc"].T + params["bc"]


def init_params(key):
    """Deterministic synthetic parameters with the same shapes as the torch module."""
    E, C = HIDDEN_DIM, NUM_CLASSES
    keys = jax.random.split(key, 7)
    cls_token = jax.random.normal(keys[0], (1, E), jnp.float32)                      # Embedding(1, E)
    in_proj_w = jax.random.normal(keys[1], (3 * E, E), jnp.float32) / math.sqrt(E)   # MHA in_proj
    in_proj_b = jax.random.normal(keys[2], (3 * E,), jnp.float32) * 0.01
    wo = jax.random.normal(keys[3], (E, E), jnp.float32) / math.sqrt(E)              # MHA out_proj
    bo = jax.random.normal(keys[4], (E,), jnp.float32) * 0.01
    wc = jax.random.normal(keys[5], (C, E), jnp.float32) / math.sqrt(E)              # classifier
    bc = jax.random.normal(keys[6], (C,), jnp.float32) * 0.01
    return dict(
        cls_token=cls_token,
        wq=in_proj_w[:E], wk=in_proj_w[E:2 * E], wv=in_proj_w[2 * E:],
        bq=in_proj_b[:E], bk=in_proj_b[E:2 * E], bv=in_proj_b[2 * E:],
        wo=wo, bo=bo, wc=wc, bc=bc,
    )


if __name__ == "__main__":
    key = jax.random.PRNGKey(0)
    kp, kx = jax.random.split(key)
    params = init_params(kp)
    prep = prepare_params(params)

    # NCHW input: batch=2, channels=hidden_dim=128, spatial=16x8 -> S=128 tokens (+1 cls).
    x = jax.random.normal(kx, (2, HIDDEN_DIM, 16, 8), jnp.float32)

    ref = reference_forward(x, params)

    # Default path: batch_block=1 -> grid=(2,) (double-buffered x DMA, v7x TC sharding).
    out = jax.block_until_ready(mha_classifier_forward(x, prep))
    # Tolerance reflects bf16 weights / bf16 MXU operands (f32 accumulation) vs f32 reference.
    np.testing.assert_allclose(np.asarray(out), np.asarray(ref), rtol=5e-2, atol=5e-2)

    # Whole-batch-in-one-step path (exercises the multi-row epilogue / concat).
    out1 = jax.block_until_ready(mha_classifier_forward(x, prep, batch_block=2))
    np.testing.assert_allclose(np.asarray(out1), np.asarray(ref), rtol=5e-2, atol=5e-2)

    print("KERNEL_OK")
</pallas_src>

<mosaic_0001>
module attributes {stable_mosaic.version = 11 : i64} {
  func.func @_mha_classifier_kernel(%arg0: i32, %arg1: memref<1x128x128xf32, #tpu.memory_space<vmem>>, %arg2: memref<128x128xbf16, #tpu.memory_space<vmem>>, %arg3: memref<128x1xf32, #tpu.memory_space<vmem>>, %arg4: memref<8x128xbf16, #tpu.memory_space<vmem>>, %arg5: memref<8x1xf32, #tpu.memory_space<vmem>>, %arg6: memref<8x1xf32, #tpu.memory_space<vmem>>, %arg7: memref<1x128xf32, #tpu.memory_space<vmem>>, %arg8: memref<8x128xf32, #tpu.memory_space<vmem>>, %arg9: memref<128x128xbf16, #tpu.memory_space<vmem>>, %arg10: memref<1x128xf32, #tpu.memory_space<vmem>>, %arg11: memref<1x1x128xf32, #tpu.memory_space<vmem>>) attributes {dimension_semantics = [#tpu.dimension_semantics<parallel>], iteration_bounds = array<i64: 2>, scalar_prefetch = 0 : i64, scratch_operands = 0 : i64, tpu.core_type = #tpu.core_type<tc>, window_params = [{transform_indices = @transform_0, window_bounds = array<i64: 1, 128, 128>}, {pipeline_mode = #tpu.pipeline_mode<synchronous>, transform_indices = @transform_1, window_bounds = array<i64: 128, 128>}, {pipeline_mode = #tpu.pipeline_mode<synchronous>, transform_indices = @transform_2, window_bounds = array<i64: 128, 1>}, {pipeline_mode = #tpu.pipeline_mode<synchronous>, transform_indices = @transform_3, window_bounds = array<i64: 8, 128>}, {pipeline_mode = #tpu.pipeline_mode<synchronous>, transform_indices = @transform_4, window_bounds = array<i64: 8, 1>}, {pipeline_mode = #tpu.pipeline_mode<synchronous>, transform_indices = @transform_5, window_bounds = array<i64: 8, 1>}, {pipeline_mode = #tpu.pipeline_mode<synchronous>, transform_indices = @transform_6, window_bounds = array<i64: 1, 128>}, {pipeline_mode = #tpu.pipeline_mode<synchronous>, transform_indices = @transform_7, window_bounds = array<i64: 8, 128>}, {pipeline_mode = #tpu.pipeline_mode<synchronous>, transform_indices = @transform_8, window_bounds = array<i64: 128, 128>}, {pipeline_mode = #tpu.pipeline_mode<synchronous>, transform_indices = @transform_9, window_bounds = array<i64: 1, 128>}, {transform_indices = @transform_10, window_bounds = array<i64: 1, 1, 128>}]} {
    %c0 = arith.constant 0 : index
    %c0_0 = arith.constant 0 : index
    %0 = vector.load %arg2[%c0, %c0_0] : memref<128x128xbf16, #tpu.memory_space<vmem>>, vector<128x128xbf16>
    %c0_1 = arith.constant 0 : index
    %c0_2 = arith.constant 0 : index
    %1 = vector.load %arg3[%c0_1, %c0_2] : memref<128x1xf32, #tpu.memory_space<vmem>>, vector<128x1xf32>
    %c0_3 = arith.constant 0 : index
    %c0_4 = arith.constant 0 : index
    %2 = vector.load %arg4[%c0_3, %c0_4] : memref<8x128xbf16, #tpu.memory_space<vmem>>, vector<8x128xbf16>
    %c0_5 = arith.constant 0 : index
    %c0_6 = arith.constant 0 : index
    %3 = vector.load %arg5[%c0_5, %c0_6] : memref<8x1xf32, #tpu.memory_space<vmem>>, vector<8x1xf32>
    %c0_7 = arith.constant 0 : index
    %c0_8 = arith.constant 0 : index
    %4 = vector.load %arg6[%c0_7, %c0_8] : memref<8x1xf32, #tpu.memory_space<vmem>>, vector<8x1xf32>
    %c0_9 = arith.constant 0 : index
    %c0_10 = arith.constant 0 : index
    %5 = vector.load %arg7[%c0_9, %c0_10] : memref<1x128xf32, #tpu.memory_space<vmem>>, vector<1x128xf32>
    %c0_11 = arith.constant 0 : index
    %c0_12 = arith.constant 0 : index
    %6 = vector.load %arg8[%c0_11, %c0_12] : memref<8x128xf32, #tpu.memory_space<vmem>>, vector<8x128xf32>
    %c0_13 = arith.constant 0 : index
    %c0_14 = arith.constant 0 : index
    %c0_15 = arith.constant 0 : index
    %7 = vector.load %arg1[%c0_13, %c0_14, %c0_15] : memref<1x128x128xf32, #tpu.memory_space<vmem>>, vector<1x128x128xf32>
    %8 = vector.shape_cast %7 : vector<1x128x128xf32> to vector<128x128xf32>
    %9 = arith.truncf %8 : vector<128x128xf32> to vector<128x128xbf16>
    %cst = arith.constant dense<0.000000e+00> : vector<128x128xf32>
    %10 = tpu.matmul %0, %9, %cst {dimension_numbers = #tpu.dot_dimension_numbers<[1], [0], [0], [1], [0, 0, 1, 1], [], []>} : vector<128x128xbf16>, vector<128x128xbf16>, vector<128x128xf32> -> vector<128x128xf32>
    %11 = vector.broadcast %1 : vector<128x1xf32> to vector<128x128xf32>
    %12 = arith.addf %10, %11 : vector<128x128xf32>
    %cst_16 = arith.constant dense<0.000000e+00> : vector<8x128xf32>
    %13 = tpu.matmul %2, %9, %cst_16 {dimension_numbers = #tpu.dot_dimension_numbers<[1], [0], [0], [1], [0, 0, 1, 1], [], []>} : vector<8x128xbf16>, vector<128x128xbf16>, vector<8x128xf32> -> vector<8x128xf32>
    %14 = vector.broadcast %3 : vector<8x1xf32> to vector<8x128xf32>
    %15 = arith.addf %13, %14 : vector<8x128xf32>
    %cst_17 = arith.constant dense<0xFF800000> : vector<8xf32>
    %16 = vector.multi_reduction <maximumf>, %15, %cst_17 [1] : vector<8x128xf32> to vector<8xf32>
    %17 = vector.shape_cast %16 : vector<8xf32> to vector<8x1xf32>
    %18 = arith.maximumf %17, %4 : vector<8x1xf32>
    %19 = vector.broadcast %18 : vector<8x1xf32> to vector<8x128xf32>
    %20 = arith.subf %15, %19 : vector<8x128xf32>
    %21 = math.exp %20 : vector<8x128xf32>
    %22 = arith.subf %4, %18 : vector<8x1xf32>
    %23 = math.exp %22 : vector<8x1xf32>
    %cst_18 = arith.constant dense<0.000000e+00> : vector<8xf32>
    %24 = vector.multi_reduction <add>, %21, %cst_18 [1] : vector<8x128xf32> to vector<8xf32>
    %25 = vector.shape_cast %24 : vector<8xf32> to vector<8x1xf32>
    %26 = arith.addf %25, %23 : vector<8x1xf32>
    %27 = arith.truncf %21 : vector<8x128xf32> to vector<8x128xbf16>
    %28 = arith.truncf %12 : vector<128x128xf32> to vector<128x128xbf16>
    %cst_19 = arith.constant dense<0.000000e+00> : vector<8x128xf32>
    %29 = tpu.matmul %27, %28, %cst_19 {dimension_numbers = #tpu.dot_dimension_numbers<[1], [1], [0], [0], [0, 0, 1, 0], [], []>} : vector<8x128xbf16>, vector<128x128xbf16>, vector<8x128xf32> -> vector<8x128xf32>
    %30 = vector.broadcast %23 : vector<8x1xf32> to vector<8x128xf32>
    %31 = vector.broadcast %5 : vector<1x128xf32> to vector<8x128xf32>
    %32 = arith.mulf %30, %31 : vector<8x128xf32>
    %33 = arith.addf %29, %32 : vector<8x128xf32>
    %34 = tpu.reciprocal %26 {approx = true} : vector<8x1xf32> -> vector<8x1xf32>
    %35 = vector.broadcast %34 : vector<8x1xf32> to vector<8x128xf32>
    %36 = arith.mulf %35, %6 : vector<8x128xf32>
    %37 = arith.mulf %33, %36 : vector<8x128xf32>
    %cst_20 = arith.constant dense<0.000000e+00> : vector<128xf32>
    %38 = vector.multi_reduction <add>, %37, %cst_20 [0] : vector<8x128xf32> to vector<128xf32>
    %39 = vector.shape_cast %38 : vector<128xf32> to vector<1x128xf32>
    %40 = arith.truncf %39 : vector<1x128xf32> to vector<1x128xbf16>
    %c0_21 = arith.constant 0 : index
    %c0_22 = arith.constant 0 : index
    %41 = vector.load %arg9[%c0_21, %c0_22] : memref<128x128xbf16, #tpu.memory_space<vmem>>, vector<128x128xbf16>
    %cst_23 = arith.constant dense<0.000000e+00> : vector<1x128xf32>
    %42 = tpu.matmul %40, %41, %cst_23 {dimension_numbers = #tpu.dot_dimension_numbers<[1], [0], [0], [1], [0, 0, 1, 1], [], []>} : vector<1x128xbf16>, vector<128x128xbf16>, vector<1x128xf32> -> vector<1x128xf32>
    %c0_24 = arith.constant 0 : index
    %c0_25 = arith.constant 0 : index
    %43 = vector.load %arg10[%c0_24, %c0_25] : memref<1x128xf32, #tpu.memory_space<vmem>>, vector<1x128xf32>
    %44 = arith.addf %42, %43 : vector<1x128xf32>
    %c0_26 = arith.constant 0 : index
    %c0_27 = arith.constant 0 : index
    %c0_28 = arith.constant 0 : index
    %45 = vector.load %arg11[%c0_26, %c0_27, %c0_28] : memref<1x1x128xf32, #tpu.memory_space<vmem>>, vector<1x1x128xf32>
    %46 = vector.shape_cast %45 : vector<1x1x128xf32> to vector<1x128xf32>
    %47 = vector.shape_cast %44 : vector<1x128xf32> to vector<1x1x128xf32>
    tpu.vector_store %arg11[%c0_26, %c0_27, %c0_28], %47 {strides = array<i32>} : memref<1x1x128xf32, #tpu.memory_space<vmem>>, vector<1x1x128xf32>,
    return
  }
  func.func @transform_0(%arg0: i32) -> (i32, i32, i32) {
    %c0_i32 = arith.constant 0 : i32
    %c0_i32_0 = arith.constant 0 : i32
    %c0_i32_1 = arith.constant 0 : i32
    return %arg0, %c0_i32, %c0_i32_0 : i32, i32, i32
  }
  func.func @transform_1(%arg0: i32) -> (i32, i32) {
    %c0_i32 = arith.constant 0 : i32
    %c0_i32_0 = arith.constant 0 : i32
    %c0_i32_1 = arith.constant 0 : i32
    return %c0_i32, %c0_i32_0 : i32, i32
  }
  func.func @transform_2(%arg0: i32) -> (i32, i32) {
    %c0_i32 = arith.constant 0 : i32
    %c0_i32_0 = arith.constant 0 : i32
    %c0_i32_1 = arith.constant 0 : i32
    return %c0_i32, %c0_i32_0 : i32, i32
  }
  func.func @transform_3(%arg0: i32) -> (i32, i32) {
    %c0_i32 = arith.constant 0 : i32
    %c0_i32_0 = arith.constant 0 : i32
    %c0_i32_1 = arith.constant 0 : i32
    return %c0_i32, %c0_i32_0 : i32, i32
  }
  func.func @transform_4(%arg0: i32) -> (i32, i32) {
    %c0_i32 = arith.constant 0 : i32
    %c0_i32_0 = arith.constant 0 : i32
    %c0_i32_1 = arith.constant 0 : i32
    return %c0_i32, %c0_i32_0 : i32, i32
  }
  func.func @transform_5(%arg0: i32) -> (i32, i32) {
    %c0_i32 = arith.constant 0 : i32
    %c0_i32_0 = arith.constant 0 : i32
    %c0_i32_1 = arith.constant 0 : i32
    return %c0_i32, %c0_i32_0 : i32, i32
  }
  func.func @transform_6(%arg0: i32) -> (i32, i32) {
    %c0_i32 = arith.constant 0 : i32
    %c0_i32_0 = arith.constant 0 : i32
    %c0_i32_1 = arith.constant 0 : i32
    return %c0_i32, %c0_i32_0 : i32, i32
  }
  func.func @transform_7(%arg0: i32) -> (i32, i32) {
    %c0_i32 = arith.constant 0 : i32
    %c0_i32_0 = arith.constant 0 : i32
    %c0_i32_1 = arith.constant 0 : i32
    return %c0_i32, %c0_i32_0 : i32, i32
  }
  func.func @transform_8(%arg0: i32) -> (i32, i32) {
    %c0_i32 = arith.constant 0 : i32
    %c0_i32_0 = arith.constant 0 : i32
    %c0_i32_1 = arith.constant 0 : i32
    return %c0_i32, %c0_i32_0 : i32, i32
  }
  func.func @transform_9(%arg0: i32) -> (i32, i32) {
    %c0_i32 = arith.constant 0 : i32
    %c0_i32_0 = arith.constant 0 : i32
    %c0_i32_1 = arith.constant 0 : i32
    return %c0_i32, %c0_i32_0 : i32, i32
  }
  func.func @transform_10(%arg0: i32) -> (i32, i32, i32) {
    %c0_i32 = arith.constant 0 : i32
    %c0_i32_0 = arith.constant 0 : i32
    %c0_i32_1 = arith.constant 0 : i32
    return %arg0, %c0_i32, %c0_i32_0 : i32, i32, i32
  }
}

</mosaic_0001>

<llo_original>
// kernel: tpu_custom_call.1
$region0: #{tpu_custom_call.1}
  #allocation0 [shape = 'u32[]', space=smem, size = 0x4, offset = 0x4, fixed_abs, tag = 'smem constant byte address 0x4 - core index']
  #allocation1 [shape = 'u32[144,128]{1,0:T(1,128)}', space=vmem, size = 0x12000, scoped, tag = 'internal scratch']
  %s0 = inlined_call_operand.hbm [shape: f32[2,128,128], index: 0, kind: input, shape index: {}]
  %s1 = inlined_call_operand.vmem [shape: bf16[128,128], index: 1, kind: input, shape index: {}]
  %s2 = inlined_call_operand.vmem [shape: f32[128,1], index: 2, kind: input, shape index: {}]
  %s3 = inlined_call_operand.vmem [shape: bf16[8,128], index: 3, kind: input, shape index: {}]
  %s4 = inlined_call_operand.vmem [shape: f32[8,1], index: 4, kind: input, shape index: {}]
  %s5 = inlined_call_operand.vmem [shape: f32[8,1], index: 5, kind: input, shape index: {}]
  %s6 = inlined_call_operand.vmem [shape: f32[1,128], index: 6, kind: input, shape index: {}]
  %s7 = inlined_call_operand.vmem [shape: f32[8,128], index: 7, kind: input, shape index: {}]
  %s8 = inlined_call_operand.vmem [shape: bf16[128,128], index: 8, kind: input, shape index: {}]
  %s9 = inlined_call_operand.vmem [shape: f32[1,128], index: 9, kind: input, shape index: {}]
  %s10 = inlined_call_operand.hbm [shape: f32[2,1,128], index: 10, kind: output, shape index: {}]
  %s11 = sld [smem:[#allocation0]]
  $region77: #{tpu_custom_call.1} parent=0
    _
  %s13 = ssub.s32 1, %s11
  %s14 = scalar_select 0, %s13, %s11
  $region1: #{tpu_custom_call.1} parent=0
    #allocation2 [shape = 'u8[131072]{0}', space=vmem, size = 0x20000, scoped, tag = 'input window, operand 0']
    #allocation3 [shape = 's32[2]{0}', space=sflag, size = 0x8, scoped, tag = 'scoped memory for tpu_custom_call.1']
    #allocation4 [shape = 's32[2]{0}', space=sflag, size = 0x8, scoped, tag = 'scoped memory for tpu_custom_call.1']
    #allocation5 [shape = 'u8[1024]{0}', space=vmem, size = 0x400, scoped, tag = 'output window, operand 0']
    %15 = vsyncpa [#allocation3], 0
    %s16 = scalar_lea.sflag [#allocation3], 1
    %17 = vsyncpa %s16, 0
    %18 = vsyncpa [#allocation4], 0
    %s19 = scalar_lea.sflag [#allocation4], 1
    %20 = vsyncpa %s19, 0
    loop: start=0, step=1, limit=4
    $region2: #{tpu_custom_call.1} parent=1 // loop_pre_header
      _
    $region3: #{tpu_custom_call.1} parent=1 // loop_header
      %s22 = sphi 0, %s26
      %p23 = scmp.ge.s32.totalorder %s22, 4
      %s32 = sphi 0, %s34
      %s35 = sphi 0, %s32
      %s36 = sphi 0, %s35
      %s52 = sphi 0, %s36
      %s56 = sphi 0, %s56
      %s58 = sphi 0, %s56
      %s59 = sphi 0, %s58
      %s73 = sphi 0, %s59
      %s77 = sphi 0, %s77
      %s79 = sphi 0, %s77
      %s80 = sphi 0, %s79
      %s94 = sphi 0, %s80
      %s98 = sphi 0, %s98
      %s100 = sphi 0, %s98
      %s101 = sphi 0, %s100
      %s115 = sphi 0, %s101
      %s119 = sphi 0, %s119
      %s121 = sphi 0, %s119
      %s122 = sphi 0, %s121
      %s136 = sphi 0, %s122
      %s140 = sphi 0, %s140
      %s142 = sphi 0, %s140
      %s143 = sphi 0, %s142
      %s157 = sphi 0, %s143
      %s161 = sphi 0, %s161
      %s163 = sphi 0, %s161
      %s164 = sphi 0, %s163
      %s178 = sphi 0, %s164
      %s182 = sphi 0, %s182
      %s184 = sphi 0, %s182
      %s185 = sphi 0, %s184
      %s199 = sphi 0, %s185
      %s203 = sphi 0, %s203
      %s205 = sphi 0, %s203
      %s206 = sphi 0, %s205
      %s220 = sphi 0, %s206
      %s224 = sphi 0, %s224
      %s226 = sphi 0, %s224
      %s227 = sphi 0, %s226
      %s241 = sphi 0, %s227
      %s247 = sphi 0, %s249
      %s250 = sphi 0, %s247
      %s251 = sphi 0, %s250
      %s267 = sphi 0, %s251
    $region4: #{tpu_custom_call.1} parent=1 // loop_header_branch
      %25 = sbr.rel (%p23) target = $region8
    $region5: #{tpu_custom_call.1} parent=1 // loop_body
      %s27 = ssub.s32 %s22, 1
      %s28 = ssub.s32 %s22, 2
      %s29 = sadd.s32 %s22, 1
      %s30 = ssub.s32 %s22, %s29
      %p31 = scmp.eq.s32.totalorder %s30, 0
      %s33 = sadd.s32 %s32, 1
      %s34 = scalar_select %p31, %s32, %s33
      %p37 = pneg %p31
      %p38 = scmp.eq.s32.totalorder %s22, 1
      %p39 = por %p37, %p38
      %p40 = scmp.ne.s32.totalorder %s32, %s35
      %p41 = scmp.eq.s32.totalorder %s22, 0
      %p42 = por %p40, %p41
      %p43 = scmp.ne.s32.totalorder %s32, %s35
      %p44 = scmp.eq.s32.totalorder %s27, 1
      %p45 = por %p43, %p44
      %p46 = scmp.ne.s32.totalorder %s35, %s36
      %p47 = scmp.eq.s32.totalorder %s27, 0
      %p48 = por %p46, %p47
      %p49 = scmp.ne.s32.totalorder %s35, %s36
      %p50 = scmp.eq.s32.totalorder %s28, 1
      %p51 = por %p49, %p50
      %p53 = scmp.ne.s32.totalorder %s36, %s52
      %p54 = scmp.eq.s32.totalorder %s28, 0
      %p55 = por %p53, %p54
      %s57 = sadd.s32 %s56, 1
      %p60 = scmp.eq.s32.totalorder %s22, 1
      %p61 = scmp.ne.s32.totalorder %s56, %s58
      %p62 = scmp.eq.s32.totalorder %s22, 0
      %p63 = por %p61, %p62
      %p64 = scmp.ne.s32.totalorder %s56, %s58
      %p65 = scmp.eq.s32.totalorder %s27, 1
      %p66 = por %p64, %p65
      %p67 = scmp.ne.s32.totalorder %s58, %s59
      %p68 = scmp.eq.s32.totalorder %s27, 0
      %p69 = por %p67, %p68
      %p70 = scmp.ne.s32.totalorder %s58, %s59
      %p71 = scmp.eq.s32.totalorder %s28, 1
      %p72 = por %p70, %p71
      %p74 = scmp.ne.s32.totalorder %s59, %s73
      %p75 = scmp.eq.s32.totalorder %s28, 0
      %p76 = por %p74, %p75
      %s78 = sadd.s32 %s77, 1
      %p81 = scmp.eq.s32.totalorder %s22, 1
      %p82 = scmp.ne.s32.totalorder %s77, %s79
      %p83 = scmp.eq.s32.totalorder %s22, 0
      %p84 = por %p82, %p83
      %p85 = scmp.ne.s32.totalorder %s77, %s79
      %p86 = scmp.eq.s32.totalorder %s27, 1
      %p87 = por %p85, %p86
      %p88 = scmp.ne.s32.totalorder %s79, %s80
      %p89 = scmp.eq.s32.totalorder %s27, 0
      %p90 = por %p88, %p89
      %p91 = scmp.ne.s32.totalorder %s79, %s80
      %p92 = scmp.eq.s32.totalorder %s28, 1
      %p93 = por %p91, %p92
      %p95 = scmp.ne.s32.totalorder %s80, %s94
      %p96 = scmp.eq.s32.totalorder %s28, 0
      %p97 = por %p95, %p96
      %s99 = sadd.s32 %s98, 1
      %p102 = scmp.eq.s32.totalorder %s22, 1
      %p103 = scmp.ne.s32.totalorder %s98, %s100
      %p104 = scmp.eq.s32.totalorder %s22, 0
      %p105 = por %p103, %p104
      %p106 = scmp.ne.s32.totalorder %s98, %s100
      %p107 = scmp.eq.s32.totalorder %s27, 1
      %p108 = por %p106, %p107
      %p109 = scmp.ne.s32.totalorder %s100, %s101
      %p110 = scmp.eq.s32.totalorder %s27, 0
      %p111 = por %p109, %p110
      %p112 = scmp.ne.s32.totalorder %s100, %s101
      %p113 = scmp.eq.s32.totalorder %s28, 1
      %p114 = por %p112, %p113
      %p116 = scmp.ne.s32.totalorder %s101, %s115
      %p117 = scmp.eq.s32.totalorder %s28, 0
      %p118 = por %p116, %p117
      %s120 = sadd.s32 %s119, 1
      %p123 = scmp.eq.s32.totalorder %s22, 1
      %p124 = scmp.ne.s32.totalorder %s119, %s121
      %p125 = scmp.eq.s32.totalorder %s22, 0
      %p126 = por %p124, %p125
      %p127 = scmp.ne.s32.totalorder %s119, %s121
      %p128 = scmp.eq.s32.totalorder %s27, 1
      %p129 = por %p127, %p128
      %p130 = scmp.ne.s32.totalorder %s121, %s122
      %p131 = scmp.eq.s32.totalorder %s27, 0
      %p132 = por %p130, %p131
      %p133 = scmp.ne.s32.totalorder %s121, %s122
      %p134 = scmp.eq.s32.totalorder %s28, 1
      %p135 = por %p133, %p134
      %p137 = scmp.ne.s32.totalorder %s122, %s136
      %p138 = scmp.eq.s32.totalorder %s28, 0
      %p139 = por %p137, %p138
      %s141 = sadd.s32 %s140, 1
      %p144 = scmp.eq.s32.totalorder %s22, 1
      %p145 = scmp.ne.s32.totalorder %s140, %s142
      %p146 = scmp.eq.s32.totalorder %s22, 0
      %p147 = por %p145, %p146
      %p148 = scmp.ne.s32.totalorder %s140, %s142
      %p149 = scmp.eq.s32.totalorder %s27, 1
      %p150 = por %p148, %p149
      %p151 = scmp.ne.s32.totalorder %s142, %s143
      %p152 = scmp.eq.s32.totalorder %s27, 0
      %p153 = por %p151, %p152
      %p154 = scmp.ne.s32.totalorder %s142, %s143
      %p155 = scmp.eq.s32.totalorder %s28, 1
      %p156 = por %p154, %p155
      %p158 = scmp.ne.s32.totalorder %s143, %s157
      %p159 = scmp.eq.s32.totalorder %s28, 0
      %p160 = por %p158, %p159
      %s162 = sadd.s32 %s161, 1
      %p165 = scmp.eq.s32.totalorder %s22, 1
      %p166 = scmp.ne.s32.totalorder %s161, %s163
      %p167 = scmp.eq.s32.totalorder %s22, 0
      %p168 = por %p166, %p167
      %p169 = scmp.ne.s32.totalorder %s161, %s163
      %p170 = scmp.eq.s32.totalorder %s27, 1
      %p171 = por %p169, %p170
      %p172 = scmp.ne.s32.totalorder %s163, %s164
      %p173 = scmp.eq.s32.totalorder %s27, 0
      %p174 = por %p172, %p173
      %p175 = scmp.ne.s32.totalorder %s163, %s164
      %p176 = scmp.eq.s32.totalorder %s28, 1
      %p177 = por %p175, %p176
      %p179 = scmp.ne.s32.totalorder %s164, %s178
      %p180 = scmp.eq.s32.totalorder %s28, 0
      %p181 = por %p179, %p180
      %s183 = sadd.s32 %s182, 1
      %p186 = scmp.eq.s32.totalorder %s22, 1
      %p187 = scmp.ne.s32.totalorder %s182, %s184
      %p188 = scmp.eq.s32.totalorder %s22, 0
      %p189 = por %p187, %p188
      %p190 = scmp.ne.s32.totalorder %s182, %s184
      %p191 = scmp.eq.s32.totalorder %s27, 1
      %p192 = por %p190, %p191
      %p193 = scmp.ne.s32.totalorder %s184, %s185
      %p194 = scmp.eq.s32.totalorder %s27, 0
      %p195 = por %p193, %p194
      %p196 = scmp.ne.s32.totalorder %s184, %s185
      %p197 = scmp.eq.s32.totalorder %s28, 1
      %p198 = por %p196, %p197
      %p200 = scmp.ne.s32.totalorder %s185, %s199
      %p201 = scmp.eq.s32.totalorder %s28, 0
      %p202 = por %p200, %p201
      %s204 = sadd.s32 %s203, 1
      %p207 = scmp.eq.s32.totalorder %s22, 1
      %p208 = scmp.ne.s32.totalorder %s203, %s205
      %p209 = scmp.eq.s32.totalorder %s22, 0
      %p210 = por %p208, %p209
      %p211 = scmp.ne.s32.totalorder %s203, %s205
      %p212 = scmp.eq.s32.totalorder %s27, 1
      %p213 = por %p211, %p212
      %p214 = scmp.ne.s32.totalorder %s205, %s206
      %p215 = scmp.eq.s32.totalorder %s27, 0
      %p216 = por %p214, %p215
      %p217 = scmp.ne.s32.totalorder %s205, %s206
      %p218 = scmp.eq.s32.totalorder %s28, 1
      %p219 = por %p217, %p218
      %p221 = scmp.ne.s32.totalorder %s206, %s220
      %p222 = scmp.eq.s32.totalorder %s28, 0
      %p223 = por %p221, %p222
      %s225 = sadd.s32 %s224, 1
      %p228 = scmp.eq.s32.totalorder %s22, 1
      %p229 = scmp.ne.s32.totalorder %s224, %s226
      %p230 = scmp.eq.s32.totalorder %s22, 0
      %p231 = por %p229, %p230
      %p232 = scmp.ne.s32.totalorder %s224, %s226
      %p233 = scmp.eq.s32.totalorder %s27, 1
      %p234 = por %p232, %p233
      %p235 = scmp.ne.s32.totalorder %s226, %s227
      %p236 = scmp.eq.s32.totalorder %s27, 0
      %p237 = por %p235, %p236
      %p238 = scmp.ne.s32.totalorder %s226, %s227
      %p239 = scmp.eq.s32.totalorder %s28, 1
      %p240 = por %p238, %p239
      %p242 = scmp.ne.s32.totalorder %s227, %s241
      %p243 = scmp.eq.s32.totalorder %s28, 0
      %p244 = por %p242, %p243
      %s245 = ssub.s32 %s22, %s29
      %p246 = scmp.eq.s32.totalorder %s245, 0
      %s248 = sadd.s32 %s247, 1
      %s249 = scalar_select %p246, %s247, %s248
      %p252 = pneg %p246
      %p253 = scmp.eq.s32.totalorder %s22, 1
      %p254 = por %p252, %p253
      %p255 = scmp.ne.s32.totalorder %s247, %s250
      %p256 = scmp.eq.s32.totalorder %s22, 0
      %p257 = por %p255, %p256
      %p258 = scmp.ne.s32.totalorder %s247, %s250
      %p259 = scmp.eq.s32.totalorder %s27, 1
      %p260 = por %p258, %p259
      %p261 = scmp.ne.s32.totalorder %s250, %s251
      %p262 = scmp.eq.s32.totalorder %s27, 0
      %p263 = por %p261, %p262
      %p264 = scmp.ne.s32.totalorder %s250, %s251
      %p265 = scmp.eq.s32.totalorder %s28, 1
      %p266 = por %p264, %p265
      %p268 = scmp.ne.s32.totalorder %s251, %s267
      %p269 = scmp.eq.s32.totalorder %s28, 0
      %p270 = por %p268, %p269
      %p271 = scmp.le.s32.totalorder 1, %s22
      %p272 = scmp.lt.s32.totalorder %s22, 3
      %p273 = pnand %p271, %p272
      %p274 = pneg %p273
      // Predicated region
      $region9: #{tpu_custom_call.1} parent=5 // pred_check
        _
      $region10: #{tpu_custom_call.1} parent=5 // pred_check_branch
        %276 = sbr.rel (%p273) target = $region12
      $region11: #{tpu_custom_call.1} parent=5 // pred_region
        %s277 = ssub.s32 %s22, 1
        // Predicated region
        $region13: #{tpu_custom_call.1} parent=11 // pred_check
          %p278 = pneg %p69
        $region14: #{tpu_custom_call.1} parent=11 // pred_check_branch
          %280 = sbr.rel (%p278) target = $region16
        $region15: #{tpu_custom_call.1} parent=11 // pred_region
          _
        $region16: #{tpu_custom_call.1} parent=11 // pred_fallthru
          _
        // Predicated region
        $region17: #{tpu_custom_call.1} parent=11 // pred_check
          %p281 = pneg %p90
        $region18: #{tpu_custom_call.1} parent=11 // pred_check_branch
          %283 = sbr.rel (%p281) target = $region20
        $region19: #{tpu_custom_call.1} parent=11 // pred_region
          _
        $region20: #{tpu_custom_call.1} parent=11 // pred_fallthru
          _
        // Predicated region
        $region21: #{tpu_custom_call.1} parent=11 // pred_check
          %p284 = pneg %p111
        $region22: #{tpu_custom_call.1} parent=11 // pred_check_branch
          %286 = sbr.rel (%p284) target = $region24
        $region23: #{tpu_custom_call.1} parent=11 // pred_region
          _
        $region24: #{tpu_custom_call.1} parent=11 // pred_fallthru
          _
        // Predicated region
        $region25: #{tpu_custom_call.1} parent=11 // pred_check
          %p287 = pneg %p132
        $region26: #{tpu_custom_call.1} parent=11 // pred_check_branch
          %289 = sbr.rel (%p287) target = $region28
        $region27: #{tpu_custom_call.1} parent=11 // pred_region
          _
        $region28: #{tpu_custom_call.1} parent=11 // pred_fallthru
          _
        // Predicated region
        $region29: #{tpu_custom_call.1} parent=11 // pred_check
          %p290 = pneg %p153
        $region30: #{tpu_custom_call.1} parent=11 // pred_check_branch
          %292 = sbr.rel (%p290) target = $region32
        $region31: #{tpu_custom_call.1} parent=11 // pred_region
          _
        $region32: #{tpu_custom_call.1} parent=11 // pred_fallthru
          _
        // Predicated region
        $region33: #{tpu_custom_call.1} parent=11 // pred_check
          %p293 = pneg %p174
        $region34: #{tpu_custom_call.1} parent=11 // pred_check_branch
          %295 = sbr.rel (%p293) target = $region36
        $region35: #{tpu_custom_call.1} parent=11 // pred_region
          _
        $region36: #{tpu_custom_call.1} parent=11 // pred_fallthru
          _
        // Predicated region
        $region37: #{tpu_custom_call.1} parent=11 // pred_check
          %p296 = pneg %p195
        $region38: #{tpu_custom_call.1} parent=11 // pred_check_branch
          %298 = sbr.rel (%p296) target = $region40
        $region39: #{tpu_custom_call.1} parent=11 // pred_region
          _
        $region40: #{tpu_custom_call.1} parent=11 // pred_fallthru
          _
        // Predicated region
        $region41: #{tpu_custom_call.1} parent=11 // pred_check
          %p299 = pneg %p216
        $region42: #{tpu_custom_call.1} parent=11 // pred_check_branch
          %301 = sbr.rel (%p299) target = $region44
        $region43: #{tpu_custom_call.1} parent=11 // pred_region
          _
        $region44: #{tpu_custom_call.1} parent=11 // pred_fallthru
          _
        // Predicated region
        $region45: #{tpu_custom_call.1} parent=11 // pred_check
          %p302 = pneg %p237
        $region46: #{tpu_custom_call.1} parent=11 // pred_check_branch
          %304 = sbr.rel (%p302) target = $region48
        $region47: #{tpu_custom_call.1} parent=11 // pred_region
          _
        $region48: #{tpu_custom_call.1} parent=11 // pred_fallthru
          _
      $region12: #{tpu_custom_call.1} parent=5 // pred_fallthru
        _
      %p305 = scmp.lt.s32.totalorder %s22, 2
      // Predicated region
      $region49: #{tpu_custom_call.1} parent=5 // pred_check
        %p306 = pneg %p305
      $region50: #{tpu_custom_call.1} parent=5 // pred_check_branch
        %308 = sbr.rel (%p306) target = $region52
      $region51: #{tpu_custom_call.1} parent=5 // pred_region
        // Predicated region
        $region53: #{tpu_custom_call.1} parent=51 // pred_check
          %p309 = pneg %p42
        $region54: #{tpu_custom_call.1} parent=51 // pred_check_branch
          %311 = sbr.rel (%p309) target = $region56
        $region55: #{tpu_custom_call.1} parent=51 // pred_region
          %s312 = sand.u32 %s32, 1
          %s313 = scalar_lea.sflag [#allocation3], %s312
          %s314 = sand.u32 %s32, 1
          %s315 = smul.addr %s314, 128
          %s316 = scalar_lea.vmem [#allocation2], %s315
          %s318 = ssub.s32 2048, 2048
          %319 = vsyncadd %s313, %s318
          %s320 = smul.addr %s22, 16
          %s321 = smul.addr %s320, 128
          %s322 = scalar_lea.hbm %s0, %s321
          %s323 = sshll.u32 %s316, 4
          %s324 = int_to_ptr.vmem [resolvable:$true] %s323
          %329 = dma.hbm_to_vmem [thread:$0]  %s322, 2048, %s324, %s313, 128, 128, 8
        $region56: #{tpu_custom_call.1} parent=51 // pred_fallthru
          _
      $region52: #{tpu_custom_call.1} parent=5 // pred_fallthru
        _
      %p330 = scmp.le.s32.totalorder 1, %s22
      %p331 = scmp.lt.s32.totalorder %s22, 3
      %p332 = pnand %p330, %p331
      %p333 = pneg %p332
      // Predicated region
      $region57: #{tpu_custom_call.1} parent=5 // pred_check
        _
      $region58: #{tpu_custom_call.1} parent=5 // pred_check_branch
        %335 = sbr.rel (%p332) target = $region60
      $region59: #{tpu_custom_call.1} parent=5 // pred_region
        %s336 = ssub.s32 %s22, 1
        %s337 = sand.u32 %s35, 1
        %s338 = scalar_lea.sflag [#allocation3], %s337
        %s339 = sand.u32 %s35, 1
        %s340 = smul.addr %s339, 128
        %s341 = scalar_lea.vmem [#allocation2], %s340
        // Predicated region
        $region61: #{tpu_custom_call.1} parent=59 // pred_check
          %p342 = pneg %p48
        $region62: #{tpu_custom_call.1} parent=59 // pred_check_branch
          %344 = sbr.rel (%p342) target = $region64
        $region63: #{tpu_custom_call.1} parent=59 // pred_region
          %345 = dma.done %s338, 2048
        $region64: #{tpu_custom_call.1} parent=59 // pred_fallthru
          _
        %s346 = sand.u32 %s35, 1
        %s347 = scalar_lea.sflag [#allocation3], %s346
        %s348 = sand.u32 %s35, 1
        %s349 = smul.addr %s348, 128
        %s350 = scalar_lea.vmem [#allocation2], %s349
        %p351 = pneg %p48
        %p352 = pneg %p45
        %p353 = pneg %p69
        %p354 = pneg %p66
        %p355 = pneg %p90
        %p356 = pneg %p87
        %p357 = pneg %p111
        %p358 = pneg %p108
        %p359 = pneg %p132
        %p360 = pneg %p129
        %p361 = pneg %p153
        %p362 = pneg %p150
        %p363 = pneg %p174
        %p364 = pneg %p171
        %p365 = pneg %p195
        %p366 = pneg %p192
        %p367 = pneg %p216
        %p368 = pneg %p213
        %p369 = pneg %p237
        %p370 = pneg %p234
        %p371 = pneg %p263
        %p372 = pneg %p260
        %s373 = sand.u32 %s250, 1
        %s374 = scalar_lea.sflag [#allocation4], %s373
        %s375 = sand.u32 %s250, 1
        %s376 = scalar_lea.vmem [#allocation5], %s375
        %v378 = vld [vmem:[%s1] sm:$0xf]
        %v379 = vld [vmem:[%s1 + $0x4] sm:$0xf]
        %v380 = vld [vmem:[%s1 + $0x8] sm:$0xf]
        %v381 = vld [vmem:[%s1 + $0xc] sm:$0xf]
        %v382 = vld [vmem:[%s1 + $0x10] sm:$0xf]
        %v383 = vld [vmem:[%s1 + $0x14] sm:$0xf]
        %v384 = vld [vmem:[%s1 + $0x18] sm:$0xf]
        %v385 = vld [vmem:[%s1 + $0x1c] sm:$0xf]
        %v386 = vld [vmem:[%s1 + $0x20] sm:$0xf]
        %v387 = vld [vmem:[%s1 + $0x24] sm:$0xf]
        %v388 = vld [vmem:[%s1 + $0x28] sm:$0xf]
        %v389 = vld [vmem:[%s1 + $0x2c] sm:$0xf]
        %v390 = vld [vmem:[%s1 + $0x30] sm:$0xf]
        %v391 = vld [vmem:[%s1 + $0x34] sm:$0xf]
        %v392 = vld [vmem:[%s1 + $0x38] sm:$0xf]
        %v393 = vld [vmem:[%s1 + $0x3c] sm:$0xf]
        %v394 = vld [vmem:[%s2] sm:$0xff]
        %v395 = vld [vmem:[%s2 + $0x8] sm:$0xff]
        %v396 = vld [vmem:[%s2 + $0x10] sm:$0xff]
        %v397 = vld [vmem:[%s2 + $0x18] sm:$0xff]
        %v398 = vld [vmem:[%s2 + $0x20] sm:$0xff]
        %v399 = vld [vmem:[%s2 + $0x28] sm:$0xff]
        %v400 = vld [vmem:[%s2 + $0x30] sm:$0xff]
        %v401 = vld [vmem:[%s2 + $0x38] sm:$0xff]
        %v402 = vld [vmem:[%s2 + $0x40] sm:$0xff]
        %v403 = vld [vmem:[%s2 + $0x48] sm:$0xff]
        %v404 = vld [vmem:[%s2 + $0x50] sm:$0xff]
        %v405 = vld [vmem:[%s2 + $0x58] sm:$0xff]
        %v406 = vld [vmem:[%s2 + $0x60] sm:$0xff]
        %v407 = vld [vmem:[%s2 + $0x68] sm:$0xff]
        %v408 = vld [vmem:[%s2 + $0x70] sm:$0xff]
        %v409 = vld [vmem:[%s2 + $0x78] sm:$0xff]
        %v410 = vld [vmem:[%s3] sm:$0xf]
        %v411 = vld [vmem:[%s4] sm:$0xff]
        %v412 = vld [vmem:[%s5] sm:$0xff]
        %v413 = vld [vmem:[%s6] sm:$0x1]
        %v414 = vld [vmem:[%s7] sm:$0xff]
        %v415 = vld [vmem:[%s341] sm:$0xff]
        %v416 = vld [vmem:[%s341 + $0x8] sm:$0xff]
        %v417 = vld [vmem:[%s341 + $0x10] sm:$0xff]
        %v418 = vld [vmem:[%s341 + $0x18] sm:$0xff]
        %v419 = vld [vmem:[%s341 + $0x20] sm:$0xff]
        %v420 = vld [vmem:[%s341 + $0x28] sm:$0xff]
        %v421 = vld [vmem:[%s341 + $0x30] sm:$0xff]
        %v422 = vld [vmem:[%s341 + $0x38] sm:$0xff]
        %v423 = vld [vmem:[%s341 + $0x40] sm:$0xff]
        %v424 = vld [vmem:[%s341 + $0x48] sm:$0xff]
        %v425 = vld [vmem:[%s341 + $0x50] sm:$0xff]
        %v426 = vld [vmem:[%s341 + $0x58] sm:$0xff]
        %v427 = vld [vmem:[%s341 + $0x60] sm:$0xff]
        %v428 = vld [vmem:[%s341 + $0x68] sm:$0xff]
        %v429 = vld [vmem:[%s341 + $0x70] sm:$0xff]
        %v430 = vld [vmem:[%s341 + $0x78] sm:$0xff]
        %v431 = vpack.c.bf16 %v416, %v415
        %v432 = vpack.c.bf16 %v418, %v417
        %v433 = vpack.c.bf16 %v420, %v419
        %v434 = vpack.c.bf16 %v422, %v421
        %v435 = vpack.c.bf16 %v424, %v423
        %v436 = vpack.c.bf16 %v426, %v425
        %v437 = vpack.c.bf16 %v428, %v427
        %v438 = vpack.c.bf16 %v430, %v429
        %440 = vset.pattern.permute.xlu0 0
        %441 = vperm.xlu0 %440, %v394
        %v442 = vpop.permute.xlu0 %441
        %445 = vset.pattern.permute.xlu0 0
        %446 = vperm.xlu0 %445, %v395
        %v447 = vpop.permute.xlu0 %446
        %450 = vset.pattern.permute.xlu0 0
        %451 = vperm.xlu0 %450, %v396
        %v452 = vpop.permute.xlu0 %451
        %455 = vset.pattern.permute.xlu0 0
        %456 = vperm.xlu0 %455, %v397
        %v457 = vpop.permute.xlu0 %456
        %460 = vset.pattern.permute.xlu0 0
        %461 = vperm.xlu0 %460, %v398
        %v462 = vpop.permute.xlu0 %461
        %465 = vset.pattern.permute.xlu0 0
        %466 = vperm.xlu0 %465, %v399
        %v467 = vpop.permute.xlu0 %466
        %470 = vset.pattern.permute.xlu0 0
        %471 = vperm.xlu0 %470, %v400
        %v472 = vpop.permute.xlu0 %471
        %475 = vset.pattern.permute.xlu0 0
        %476 = vperm.xlu0 %475, %v401
        %v477 = vpop.permute.xlu0 %476
        %480 = vset.pattern.permute.xlu0 0
        %481 = vperm.xlu0 %480, %v402
        %v482 = vpop.permute.xlu0 %481
        %485 = vset.pattern.permute.xlu0 0
        %486 = vperm.xlu0 %485, %v403
        %v487 = vpop.permute.xlu0 %486
        %490 = vset.pattern.permute.xlu0 0
        %491 = vperm.xlu0 %490, %v404
        %v492 = vpop.permute.xlu0 %491
        %495 = vset.pattern.permute.xlu0 0
        %496 = vperm.xlu0 %495, %v405
        %v497 = vpop.permute.xlu0 %496
        %500 = vset.pattern.permute.xlu0 0
        %501 = vperm.xlu0 %500, %v406
        %v502 = vpop.permute.xlu0 %501
        %505 = vset.pattern.permute.xlu0 0
        %506 = vperm.xlu0 %505, %v407
        %v507 = vpop.permute.xlu0 %506
        %510 = vset.pattern.permute.xlu0 0
        %511 = vperm.xlu0 %510, %v408
        %v512 = vpop.permute.xlu0 %511
        %515 = vset.pattern.permute.xlu0 0
        %516 = vperm.xlu0 %515, %v409
        %v517 = vpop.permute.xlu0 %516
        %v535 = vunpack.c.l.b16 %v378
        %v536 = vunpack.c.l.b16 %v379
        %v537 = vunpack.c.l.b16 %v380
        %v538 = vunpack.c.l.b16 %v381
        %v539 = vunpack.c.l.b16 %v382
        %v540 = vunpack.c.l.b16 %v383
        %v541 = vunpack.c.l.b16 %v384
        %v542 = vunpack.c.l.b16 %v385
        %v543 = vunpack.c.l.b16 %v386
        %v544 = vunpack.c.l.b16 %v387
        %v545 = vunpack.c.l.b16 %v388
        %v546 = vunpack.c.l.b16 %v389
        %v547 = vunpack.c.l.b16 %v390
        %v548 = vunpack.c.l.b16 %v391
        %v549 = vunpack.c.l.b16 %v392
        %v550 = vunpack.c.l.b16 %v393
        %v551 = vpack.c.b16 %v536, %v535
        %v552 = vpack.c.b16 %v538, %v537
        %v553 = vpack.c.b16 %v540, %v539
        %v554 = vpack.c.b16 %v542, %v541
        %v555 = vpack.c.b16 %v544, %v543
        %v556 = vpack.c.b16 %v546, %v545
        %v557 = vpack.c.b16 %v548, %v547
        %v558 = vpack.c.b16 %v550, %v549
        %567 = vmatprep.subr.bf16.mxu0 0
        %568 = vmatpush1.bf16.msra.mxu0 %v431
        %569 = vmatprep.subr.bf16.mxu0 0
        %570 = vmatpush1.bf16.msra.mxu0 %v432
        %571 = vmatprep.subr.bf16.mxu0 0
        %572 = vmatpush1.bf16.msra.mxu0 %v433
        %573 = vmatprep.subr.bf16.mxu0 0
        %574 = vmatpush1.bf16.msra.mxu0 %v434
        %575 = vmatprep.subr.bf16.mxu0 0
        %576 = vmatpush1.bf16.msra.mxu0 %v435
        %577 = vmatprep.subr.bf16.mxu0 0
        %578 = vmatpush1.bf16.msra.mxu0 %v436
        %579 = vmatprep.subr.bf16.mxu0 0
        %580 = vmatpush1.bf16.msra.mxu0 %v437
        %581 = vmatprep.subr.bf16.mxu0 0
        %582 = vmatpush1.bf16.msra.mxu0 %v438
        %583 = vmatprep.subr.bf16.mxu0 0
        %584 = vmatpush1.bf16.msra.mxu0 0
        %585 = vmatprep.subr.bf16.mxu0 0
        %586 = vmatpush1.bf16.msra.mxu0 0
        %587 = vmatprep.subr.bf16.mxu0 0
        %588 = vmatpush1.bf16.msra.mxu0 0
        %589 = vmatprep.subr.bf16.mxu0 0
        %590 = vmatpush1.bf16.msra.mxu0 0
        %591 = vmatprep.subr.bf16.mxu0 0
        %592 = vmatpush1.bf16.msra.mxu0 0
        %593 = vmatprep.subr.bf16.mxu0 0
        %594 = vmatpush1.bf16.msra.mxu0 0
        %595 = vmatprep.subr.bf16.mxu0 0
        %596 = vmatpush1.bf16.msra.mxu0 0
        %597 = vmatprep.subr.bf16.mxu0 0
        %598 = vmatpush1.bf16.msra.mxu0 0
        %599 = vmatprep.mubr.bf16.mxu0 0
        %600 = vmatmul.mubr.bf16.gmra.mrb[0].mxu0 %v551
        %v601 = vpop.f32.mrb[0].mxu0
        %v602 = vadd.f32 %v442, %v601
        %v603 = vpop.f32.mrb[0].mxu0
        %v604 = vpop.f32.mrb[0].mxu0
        %v605 = vadd.f32 %v447, %v604
        %v606 = vpop.f32.mrb[0].mxu0
        %607 = vmatprep.mubr.bf16.mxu0 0
        %608 = vmatmul.mubr.bf16.gmra.mrb[0].mxu0 %v552
        %v609 = vpop.f32.mrb[0].mxu0
        %v610 = vadd.f32 %v452, %v609
        %v611 = vpop.f32.mrb[0].mxu0
        %v612 = vpop.f32.mrb[0].mxu0
        %v613 = vadd.f32 %v457, %v612
        %v614 = vpop.f32.mrb[0].mxu0
        %615 = vmatprep.mubr.bf16.mxu0 0
        %616 = vmatmul.mubr.bf16.gmra.mrb[0].mxu0 %v553
        %v617 = vpop.f32.mrb[0].mxu0
        %v618 = vadd.f32 %v462, %v617
        %v619 = vpop.f32.mrb[0].mxu0
        %v620 = vpop.f32.mrb[0].mxu0
        %v621 = vadd.f32 %v467, %v620
        %v622 = vpop.f32.mrb[0].mxu0
        %623 = vmatprep.mubr.bf16.mxu0 0
        %624 = vmatmul.mubr.bf16.gmra.mrb[0].mxu0 %v554
        %v625 = vpop.f32.mrb[0].mxu0
        %v626 = vadd.f32 %v472, %v625
        %v627 = vpop.f32.mrb[0].mxu0
        %v628 = vpop.f32.mrb[0].mxu0
        %v629 = vadd.f32 %v477, %v628
        %v630 = vpop.f32.mrb[0].mxu0
        %631 = vmatprep.mubr.bf16.mxu0 0
        %632 = vmatmul.mubr.bf16.gmra.mrb[0].mxu0 %v555
        %v633 = vpop.f32.mrb[0].mxu0
        %v634 = vadd.f32 %v482, %v633
        %v635 = vpop.f32.mrb[0].mxu0
        %v636 = vpop.f32.mrb[0].mxu0
        %v637 = vadd.f32 %v487, %v636
        %v638 = vpop.f32.mrb[0].mxu0
        %639 = vmatprep.mubr.bf16.mxu0 0
        %640 = vmatmul.mubr.bf16.gmra.mrb[0].mxu0 %v556
        %v641 = vpop.f32.mrb[0].mxu0
        %v642 = vadd.f32 %v492, %v641
        %v643 = vpop.f32.mrb[0].mxu0
        %v644 = vpop.f32.mrb[0].mxu0
        %v645 = vadd.f32 %v497, %v644
        %v646 = vpop.f32.mrb[0].mxu0
        %647 = vmatprep.mubr.bf16.mxu0 0
        %648 = vmatmul.mubr.bf16.gmra.mrb[0].mxu0 %v557
        %v649 = vpop.f32.mrb[0].mxu0
        %v650 = vadd.f32 %v502, %v649
        %v651 = vpop.f32.mrb[0].mxu0
        %v652 = vpop.f32.mrb[0].mxu0
        %v653 = vadd.f32 %v507, %v652
        %v654 = vpop.f32.mrb[0].mxu0
        %655 = vmatprep.mubr.bf16.mxu0 0
        %656 = vmatmul.mubr.bf16.gmra.mrb[0].mxu0 %v558
        %v657 = vpop.f32.mrb[0].mxu0
        %v658 = vadd.f32 %v512, %v657
        %v659 = vpop.f32.mrb[0].mxu0
        %v660 = vpop.f32.mrb[0].mxu0
        %v661 = vadd.f32 %v517, %v660
        %v662 = vpop.f32.mrb[0].mxu0
        %663 = vdwg.mxu0
        %665 = vset.pattern.permute.xlu0 0
        %666 = vperm.xlu0 %665, %v411
        %v667 = vpop.permute.xlu0 %666
        %669 = vmatprep.subr.bf16.mxu0 0
        %670 = vmatpush1.bf16.msra.mxu0 %v431
        %671 = vmatprep.subr.bf16.mxu0 0
        %672 = vmatpush1.bf16.msra.mxu0 %v432
        %673 = vmatprep.subr.bf16.mxu0 0
        %674 = vmatpush1.bf16.msra.mxu0 %v433
        %675 = vmatprep.subr.bf16.mxu0 0
        %676 = vmatpush1.bf16.msra.mxu0 %v434
        %677 = vmatprep.subr.bf16.mxu0 0
        %678 = vmatpush1.bf16.msra.mxu0 %v435
        %679 = vmatprep.subr.bf16.mxu0 0
        %680 = vmatpush1.bf16.msra.mxu0 %v436
        %681 = vmatprep.subr.bf16.mxu0 0
        %682 = vmatpush1.bf16.msra.mxu0 %v437
        %683 = vmatprep.subr.bf16.mxu0 0
        %684 = vmatpush1.bf16.msra.mxu0 %v438
        %685 = vmatprep.subr.bf16.mxu0 0
        %686 = vmatpush1.bf16.msra.mxu0 0
        %687 = vmatprep.subr.bf16.mxu0 0
        %688 = vmatpush1.bf16.msra.mxu0 0
        %689 = vmatprep.subr.bf16.mxu0 0
        %690 = vmatpush1.bf16.msra.mxu0 0
        %691 = vmatprep.subr.bf16.mxu0 0
        %692 = vmatpush1.bf16.msra.mxu0 0
        %693 = vmatprep.subr.bf16.mxu0 0
        %694 = vmatpush1.bf16.msra.mxu0 0
        %695 = vmatprep.subr.bf16.mxu0 0
        %696 = vmatpush1.bf16.msra.mxu0 0
        %697 = vmatprep.subr.bf16.mxu0 0
        %698 = vmatpush1.bf16.msra.mxu0 0
        %699 = vmatprep.subr.bf16.mxu0 0
        %700 = vmatpush1.bf16.msra.mxu0 0
        %701 = vmatprep.mubr.bf16.mxu0 0
        %702 = vmatmul.mubr.bf16.gmra.mrb[0].mxu0 %v410
        %v703 = vpop.f32.mrb[0].mxu0
        %v704 = vadd.f32 %v667, %v703
        %v705 = vpop.f32.mrb[0].mxu0
        %v706 = vpop.f32.mrb[0].mxu0
        %v707 = vpop.f32.mrb[0].mxu0
        %708 = vdwg.mxu0
        %709 = vmax.xlane.f32.xlu0 %v704
        %v710 = vpop.xlane.xlu0 %709
        %v711 = vmax.f32 %v710, %v412
        %713 = vset.pattern.permute.xlu0 0
        %714 = vperm.xlu0 %713, %v711
        %v715 = vpop.permute.xlu0 %714
        %v717 = vsub.f32 %v704, %v715
        %v718 = vmul.f32 %v717, 1.442695
        %v719 = vpow.pop %v718
        %v720 = vsub.f32 %v412, %v711
        %v721 = vmul.f32 %v720, 1.442695
        %v722 = vpow.pop %v721
        %723 = vadd.xlane.f32.xlu0 %v719
        %v724 = vpop.xlane.xlu0 %723
        %v725 = vadd.f32 %v724, %v722
        %v726 = vpack.c.bf16 %v719, %v719
        %v727 = vpack.c.bf16 %v605, %v602
        %v728 = vpack.c.bf16 %v613, %v610
        %v729 = vpack.c.bf16 %v621, %v618
        %v730 = vpack.c.bf16 %v629, %v626
        %v731 = vpack.c.bf16 %v637, %v634
        %v732 = vpack.c.bf16 %v645, %v642
        %v733 = vpack.c.bf16 %v653, %v650
        %v734 = vpack.c.bf16 %v661, %v658
        %736 = vset.pattern.permute.xlu0 0
        %737 = vperm.xlu0 %736, %v722
        %v738 = vpop.permute.xlu0 %737
        %v741 = vlaneseq
        %v742 = vshrl.u32 %v741, 7
        %v743 = vsub.s32 0, %v742
        %v744 = vrot.slane %v413, %v743
        %v746 = vmul.f32 %v738, %v744
        %747 = vmatprep.subr.bf16.mxu0 0
        %748 = vmatpush1.bf16.xpose.msra.mxu0 %v727
        %749 = vmatprep.subr.bf16.mxu0 0
        %750 = vmatpush1.bf16.xpose.msra.mxu0 %v728
        %751 = vmatprep.subr.bf16.mxu0 0
        %752 = vmatpush1.bf16.xpose.msra.mxu0 %v729
        %753 = vmatprep.subr.bf16.mxu0 0
        %754 = vmatpush1.bf16.xpose.msra.mxu0 %v730
        %755 = vmatprep.subr.bf16.mxu0 0
        %756 = vmatpush1.bf16.xpose.msra.mxu0 %v731
        %757 = vmatprep.subr.bf16.mxu0 0
        %758 = vmatpush1.bf16.xpose.msra.mxu0 %v732
        %759 = vmatprep.subr.bf16.mxu0 0
        %760 = vmatpush1.bf16.xpose.msra.mxu0 %v733
        %761 = vmatprep.subr.bf16.mxu0 0
        %762 = vmatpush1.bf16.xpose.msra.mxu0 %v734
        %763 = vmatprep.subr.bf16.mxu0 0
        %764 = vmatpush1.bf16.xpose.msra.mxu0 0
        %765 = vmatprep.subr.bf16.mxu0 0
        %766 = vmatpush1.bf16.xpose.msra.mxu0 0
        %767 = vmatprep.subr.bf16.mxu0 0
        %768 = vmatpush1.bf16.xpose.msra.mxu0 0
        %769 = vmatprep.subr.bf16.mxu0 0
        %770 = vmatpush1.bf16.xpose.msra.mxu0 0
        %771 = vmatprep.subr.bf16.mxu0 0
        %772 = vmatpush1.bf16.xpose.msra.mxu0 0
        %773 = vmatprep.subr.bf16.mxu0 0
        %774 = vmatpush1.bf16.xpose.msra.mxu0 0
        %775 = vmatprep.subr.bf16.mxu0 0
        %776 = vmatpush1.bf16.xpose.msra.mxu0 0
        %777 = vmatprep.subr.bf16.mxu0 0
        %778 = vmatpush1.bf16.xpose.msra.mxu0 0
        %779 = vmatprep.mubr.bf16.mxu0 0
        %780 = vmatmul.mubr.bf16.gmra.mrb[0].mxu0 %v726
        %v781 = vpop.f32.mrb[0].mxu0
        %v782 = vadd.f32 %v746, %v781
        %v783 = vpop.f32.mrb[0].mxu0
        %v784 = vpop.f32.mrb[0].mxu0
        %v785 = vpop.f32.mrb[0].mxu0
        %786 = vdwg.mxu0
        %v787 = vrcp.pop %v725
        %789 = vset.pattern.permute.xlu0 0
        %790 = vperm.xlu0 %789, %v787
        %v791 = vpop.permute.xlu0 %790
        %v793 = vmul.f32 %v791, %v414
        %v794 = vmul.f32 %v782, %v793
        %v795 = vrot.slane %v794, 4
        %v796 = vadd.f32 %v794, %v795
        %v797 = vrot.slane %v796, 2
        %v798 = vadd.f32 %v796, %v797
        %v799 = vrot.slane %v798, 1
        %v800 = vadd.f32 %v798, %v799
        %v801 = vpack.c.bf16 %v800, %v800
        %v802 = vld [vmem:[%s8] sm:$0xf]
        %v803 = vld [vmem:[%s8 + $0x4] sm:$0xf]
        %v804 = vld [vmem:[%s8 + $0x8] sm:$0xf]
        %v805 = vld [vmem:[%s8 + $0xc] sm:$0xf]
        %v806 = vld [vmem:[%s8 + $0x10] sm:$0xf]
        %v807 = vld [vmem:[%s8 + $0x14] sm:$0xf]
        %v808 = vld [vmem:[%s8 + $0x18] sm:$0xf]
        %v809 = vld [vmem:[%s8 + $0x1c] sm:$0xf]
        %v810 = vld [vmem:[%s8 + $0x20] sm:$0xf]
        %v811 = vld [vmem:[%s8 + $0x24] sm:$0xf]
        %v812 = vld [vmem:[%s8 + $0x28] sm:$0xf]
        %v813 = vld [vmem:[%s8 + $0x2c] sm:$0xf]
        %v814 = vld [vmem:[%s8 + $0x30] sm:$0xf]
        %v815 = vld [vmem:[%s8 + $0x34] sm:$0xf]
        %v816 = vld [vmem:[%s8 + $0x38] sm:$0xf]
        %v817 = vld [vmem:[%s8 + $0x3c] sm:$0xf]
        %v818 = vld [vmem:[%s9] sm:$0x1]
        %v835 = vunpack.c.l.b16 %v802
        %v836 = vunpack.c.l.b16 %v803
        %v837 = vunpack.c.l.b16 %v804
        %v838 = vunpack.c.l.b16 %v805
        %v839 = vunpack.c.l.b16 %v806
        %v840 = vunpack.c.l.b16 %v807
        %v841 = vunpack.c.l.b16 %v808
        %v842 = vunpack.c.l.b16 %v809
        %v843 = vunpack.c.l.b16 %v810
        %v844 = vunpack.c.l.b16 %v811
        %v845 = vunpack.c.l.b16 %v812
        %v846 = vunpack.c.l.b16 %v813
        %v847 = vunpack.c.l.b16 %v814
        %v848 = vunpack.c.l.b16 %v815
        %v849 = vunpack.c.l.b16 %v816
        %v850 = vunpack.c.l.b16 %v817
        %v851 = vpack.c.b16 %v836, %v835
        %v852 = vpack.c.b16 %v838, %v837
        %v853 = vpack.c.b16 %v840, %v839
        %v854 = vpack.c.b16 %v842, %v841
        %v855 = vpack.c.b16 %v844, %v843
        %v856 = vpack.c.b16 %v846, %v845
        %v857 = vpack.c.b16 %v848, %v847
        %v858 = vpack.c.b16 %v850, %v849
        %867 = vmatprep.subr.bf16.mxu0 0
        %868 = vmatpush1.bf16.msra.mxu0 %v851
        %869 = vmatprep.subr.bf16.mxu0 0
        %870 = vmatpush1.bf16.msra.mxu0 %v852
        %871 = vmatprep.subr.bf16.mxu0 0
        %872 = vmatpush1.bf16.msra.mxu0 %v853
        %873 = vmatprep.subr.bf16.mxu0 0
        %874 = vmatpush1.bf16.msra.mxu0 %v854
        %875 = vmatprep.subr.bf16.mxu0 0
        %876 = vmatpush1.bf16.msra.mxu0 %v855
        %877 = vmatprep.subr.bf16.mxu0 0
        %878 = vmatpush1.bf16.msra.mxu0 %v856
        %879 = vmatprep.subr.bf16.mxu0 0
        %880 = vmatpush1.bf16.msra.mxu0 %v857
        %881 = vmatprep.subr.bf16.mxu0 0
        %882 = vmatpush1.bf16.msra.mxu0 %v858
        %883 = vmatprep.subr.bf16.mxu0 0
        %884 = vmatpush1.bf16.msra.mxu0 0
        %885 = vmatprep.subr.bf16.mxu0 0
        %886 = vmatpush1.bf16.msra.mxu0 0
        %887 = vmatprep.subr.bf16.mxu0 0
        %888 = vmatpush1.bf16.msra.mxu0 0
        %889 = vmatprep.subr.bf16.mxu0 0
        %890 = vmatpush1.bf16.msra.mxu0 0
        %891 = vmatprep.subr.bf16.mxu0 0
        %892 = vmatpush1.bf16.msra.mxu0 0
        %893 = vmatprep.subr.bf16.mxu0 0
        %894 = vmatpush1.bf16.msra.mxu0 0
        %895 = vmatprep.subr.bf16.mxu0 0
        %896 = vmatpush1.bf16.msra.mxu0 0
        %897 = vmatprep.subr.bf16.mxu0 0
        %898 = vmatpush1.bf16.msra.mxu0 0
        %899 = vmatprep.mubr.bf16.mxu0 0
        %900 = vmatmul.mubr.bf16.gmra.mrb[0].mxu0 %v801
        %v901 = vpop.f32.mrb[0].mxu0
        %v902 = vadd.f32 %v818, %v901
        %v903 = vpop.f32.mrb[0].mxu0
        %v904 = vpop.f32.mrb[0].mxu0
        %v905 = vpop.f32.mrb[0].mxu0
        %906 = vdwg.mxu0
        %907 = vst [vmem:[%s376] sm:$0x1] %v902
        %s908 = sand.u32 %s250, 1
        %s909 = scalar_lea.sflag [#allocation4], %s908
        %s910 = sand.u32 %s250, 1
        %s911 = scalar_lea.vmem [#allocation5], %s910
        // Predicated region
        $region65: #{tpu_custom_call.1} parent=59 // pred_check
          %p912 = pneg %p260
        $region66: #{tpu_custom_call.1} parent=59 // pred_check_branch
          %914 = sbr.rel (%p912) target = $region68
        $region67: #{tpu_custom_call.1} parent=59 // pred_region
          %s916 = ssub.s32 16, 16
          %917 = vsyncadd %s909, %s916
          %s918 = smul.addr %s27, 16
          %s919 = scalar_lea.hbm %s10, %s918
          %s921 = sshll.u32 %s911, 4
          %s922 = int_to_ptr.vmem [resolvable:$true] %s921
          %924 = dma.vmem_to_hbm [thread:$0]  %s922, 16, %s919, %s909
        $region68: #{tpu_custom_call.1} parent=59 // pred_fallthru
          _
      $region60: #{tpu_custom_call.1} parent=5 // pred_fallthru
        _
      %p925 = scmp.le.s32.totalorder 2, %s22
      // Predicated region
      $region69: #{tpu_custom_call.1} parent=5 // pred_check
        %p926 = pneg %p925
      $region70: #{tpu_custom_call.1} parent=5 // pred_check_branch
        %928 = sbr.rel (%p926) target = $region72
      $region71: #{tpu_custom_call.1} parent=5 // pred_region
        %s929 = ssub.s32 %s22, 2
        // Predicated region
        $region73: #{tpu_custom_call.1} parent=71 // pred_check
          %p930 = pneg %p266
        $region74: #{tpu_custom_call.1} parent=71 // pred_check_branch
          %932 = sbr.rel (%p930) target = $region76
        $region75: #{tpu_custom_call.1} parent=71 // pred_region
          %s933 = sand.u32 %s251, 1
          %s934 = scalar_lea.sflag [#allocation4], %s933
          %s935 = sand.u32 %s251, 1
          %s936 = scalar_lea.vmem [#allocation5], %s935
          %937 = dma.done %s934, 16
        $region76: #{tpu_custom_call.1} parent=71 // pred_fallthru
          _
      $region72: #{tpu_custom_call.1} parent=5 // pred_fallthru
        _
    $region6: #{tpu_custom_call.1} parent=1 // loop_footer
      %s26 = sadd.s32 1, %s22
    $region7: #{tpu_custom_call.1} parent=1 // loop_footer_branch
      %21 = sbr.rel target = $region3
    $region8: #{tpu_custom_call.1} parent=1 // loop_exit
      _
    %938 = vsyncpa [#allocation3], 1
    %s939 = scalar_lea.sflag [#allocation3], 1
    %940 = vsyncpa %s939, 1
    %941 = vsyncpa [#allocation4], 1
    %s942 = scalar_lea.sflag [#allocation4], 1
    %943 = vsyncpa %s942, 1

</llo_original>
